<compile_context>
chip_gen: v7x
topology: tpu7x:2x2x1
jax: 0.10.0
libtpu: 0.0.40
codegen_flags: <defaults>
</compile_context>

<pallas_src>
import jax
import jax.numpy as jnp
from jax.experimental import pallas as pl
from jax.experimental.pallas import tpu as pltpu

_LANE = 128


def _round_up(n, m):
    return ((n + m - 1) // m) * m


def _siamese_embed_kernel(x1_ref, x2_ref, w1_ref, b1_ref, w2_ref, b2_ref,
                          out_ref, xcat_ref):
    # x1_ref, x2_ref: (B, Dp) f32     -- the two flattened image batches
    # w1_ref: (Dp, Hp) bf16, b1_ref: (1, Hp) f32
    # w2_ref: (Hp, Ep) bf16, b2_ref: (1, Ep) f32
    # out_ref: (2B, Ep) f32           -- lane-dense output slab
    # xcat_ref: (2B, Dp) f32 VMEM scratch used to merge the two branches
    B = x1_ref.shape[0]

    # Merge both siamese branches into one M = 2B matmul (weights are shared).
    xcat_ref[0:B, :] = x1_ref[...]
    xcat_ref[B:2 * B, :] = x2_ref[...]
    x = xcat_ref[...].astype(jnp.bfloat16)

    # Layer 1: bf16 MXU matmul with f32 accumulation, f32 bias-add + ReLU.
    h = jnp.dot(x, w1_ref[...], preferred_element_type=jnp.float32) + b1_ref[...]
    h = jnp.maximum(h, 0.0)

    # Layer 2: bf16 MXU matmul with f32 accumulation, f32 bias-add.
    e = jnp.dot(h.astype(jnp.bfloat16), w2_ref[...],
                preferred_element_type=jnp.float32) + b2_ref[...]
    out_ref[...] = e.astype(out_ref.dtype)


def prepare_params(params):
    """One-time (outside the kernel) zero-padding of all minor dims to 128
    lanes and bf16 cast of the weights.  Zero padding keeps the math exact:
    padded W1 rows see zero inputs, padded W1 columns give h_pad = relu(0+0)=0
    and padded W2 rows/cols therefore add 0."""
    w1, b1, w2, b2 = params
    D, H = w1.shape
    E = w2.shape[1]
    Dp, Hp, Ep = _round_up(D, _LANE), _round_up(H, _LANE), _round_up(E, _LANE)
    w1p = jnp.zeros((Dp, Hp), jnp.bfloat16).at[:D, :H].set(w1.astype(jnp.bfloat16))
    b1p = jnp.zeros((1, Hp), jnp.float32).at[:, :H].set(b1)
    w2p = jnp.zeros((Hp, Ep), jnp.bfloat16).at[:H, :E].set(w2.astype(jnp.bfloat16))
    b2p = jnp.zeros((1, Ep), jnp.float32).at[:, :E].set(b2)
    return (w1p, b1p, w2p, b2p), D, E


def siamese_forward(img1, img2, padded_params, in_dim, emb_dim):
    """Shared embedding net applied to both images in one fused kernel call.

    img1, img2: (B, C, H, W) float32
    returns: (output1, output2), each (B, emb_dim) float32
    """
    w1p, b1p, w2p, b2p = padded_params
    B = img1.shape[0]
    Dp = w1p.shape[0]
    Ep = w2p.shape[1]

    # Free views (no HBM copy): contiguous NCHW -> (B, D).
    x1 = img1.reshape(B, in_dim)
    x2 = img2.reshape(B, in_dim)
    if Dp != in_dim:
        # Only taken when the flattened feature dim is not a lane multiple.
        pad = ((0, 0), (0, Dp - in_dim))
        x1 = jnp.pad(x1, pad)
        x2 = jnp.pad(x2, pad)

    vmem = pl.BlockSpec(memory_space=pltpu.MemorySpace.VMEM)
    out = pl.pallas_call(
        _siamese_embed_kernel,
        out_shape=jax.ShapeDtypeStruct((2 * B, Ep), jnp.float32),
        in_specs=[vmem] * 6,
        out_specs=vmem,
        scratch_shapes=[pltpu.VMEM((2 * B, Dp), jnp.float32)],
    )(x1, x2, w1p, b1p, w2p, b2p)

    # Slice the padded, lane-dense (2B, Ep) slab back to the two embeddings.
    return out[:B, :emb_dim], out[B:, :emb_dim]


def init_params(key, D, H, E):
    k1, k2, k3, k4 = jax.random.split(key, 4)
    w1 = jax.random.normal(k1, (D, H), jnp.float32) * (1.0 / jnp.sqrt(D))
    b1 = jax.random.normal(k2, (1, H), jnp.float32) * 0.01
    w2 = jax.random.normal(k3, (H, E), jnp.float32) * (1.0 / jnp.sqrt(H))
    b2 = jax.random.normal(k4, (1, E), jnp.float32) * 0.01
    return (w1, b1, w2, b2)


def _reference_f32(img1, img2, params):
    # Pure-f32 reference (PyTorch module semantics).
    w1, b1, w2, b2 = params

    def embed(img):
        B = img.shape[0]
        x = img.reshape(B, -1)
        h = jnp.maximum(x @ w1 + b1, 0.0)
        return h @ w2 + b2

    return embed(img1), embed(img2)


def _reference_bf16(img1, img2, params):
    # Reference with the kernel's numerics (bf16 matmul inputs, f32 accum).
    w1, b1, w2, b2 = params

    def embed(img):
        B = img.shape[0]
        x = img.reshape(B, -1).astype(jnp.bfloat16)
        h = jnp.dot(x, w1.astype(jnp.bfloat16),
                    preferred_element_type=jnp.float32) + b1
        h = jnp.maximum(h, 0.0)
        return jnp.dot(h.astype(jnp.bfloat16), w2.astype(jnp.bfloat16),
                       preferred_element_type=jnp.float32) + b2

    return embed(img1), embed(img2)


if __name__ == "__main__":
    B, C, Himg, Wimg = 2, 4, 16, 16     # small NCHW images
    D = C * Himg * Wimg                 # 1024 flattened features
    HID, EMB = 32, 32                   # hidden / embedding dims

    key = jax.random.PRNGKey(0)
    k_img1, k_img2, k_params = jax.random.split(key, 3)
    img1 = jax.random.normal(k_img1, (B, C, Himg, Wimg), jnp.float32)
    img2 = jax.random.normal(k_img2, (B, C, Himg, Wimg), jnp.float32)
    params = init_params(k_params, D, HID, EMB)

    padded_params, in_dim, emb_dim = prepare_params(params)
    out1, out2 = siamese_forward(img1, img2, padded_params, in_dim, emb_dim)
    jax.block_until_ready((out1, out2))

    assert out1.shape == (B, EMB) and out2.shape == (B, EMB)

    # Tight check against a reference with matching (bf16-matmul) numerics.
    q1, q2 = _reference_bf16(img1, img2, params)
    assert jnp.allclose(out1, q1, atol=2e-3, rtol=2e-3)
    assert jnp.allclose(out2, q2, atol=2e-3, rtol=2e-3)

    # Looser sanity check against the pure-f32 PyTorch-semantics reference.
    r1, r2 = _reference_f32(img1, img2, params)
    assert jnp.allclose(out1, r1, atol=5e-2, rtol=5e-2)
    assert jnp.allclose(out2, r2, atol=5e-2, rtol=5e-2)

    print("KERNEL_OK")
</pallas_src>

<mosaic_0001>
module attributes {stable_mosaic.version = 11 : i64} {
  func.func @_siamese_embed_kernel(%arg0: memref<2x1024xf32, #tpu.memory_space<vmem>>, %arg1: memref<2x1024xf32, #tpu.memory_space<vmem>>, %arg2: memref<1024x128xbf16, #tpu.memory_space<vmem>>, %arg3: memref<1x128xf32, #tpu.memory_space<vmem>>, %arg4: memref<128x128xbf16, #tpu.memory_space<vmem>>, %arg5: memref<1x128xf32, #tpu.memory_space<vmem>>, %arg6: memref<4x128xf32, #tpu.memory_space<vmem>>, %arg7: memref<4x1024xf32, #tpu.memory_space<vmem>>) attributes {dimension_semantics = [], scalar_prefetch = 0 : i64, scratch_operands = 1 : i64, tpu.core_type = #tpu.core_type<tc>} {
    %c0 = arith.constant 0 : index
    %c0_0 = arith.constant 0 : index
    %0 = vector.load %arg0[%c0, %c0_0] : memref<2x1024xf32, #tpu.memory_space<vmem>>, vector<2x1024xf32>
    %c0_1 = arith.constant 0 : index
    %c0_2 = arith.constant 0 : index
    %1 = vector.load %arg7[%c0_1, %c0_2] : memref<4x1024xf32, #tpu.memory_space<vmem>>, vector<2x1024xf32>
    tpu.vector_store %arg7[%c0_1, %c0_2], %0 {strides = array<i32>} : memref<4x1024xf32, #tpu.memory_space<vmem>>, vector<2x1024xf32>,
    %c0_3 = arith.constant 0 : index
    %c0_4 = arith.constant 0 : index
    %2 = vector.load %arg1[%c0_3, %c0_4] : memref<2x1024xf32, #tpu.memory_space<vmem>>, vector<2x1024xf32>
    %c2 = arith.constant 2 : index
    %c0_5 = arith.constant 0 : index
    %3 = vector.load %arg7[%c2, %c0_5] : memref<4x1024xf32, #tpu.memory_space<vmem>>, vector<2x1024xf32>
    tpu.vector_store %arg7[%c2, %c0_5], %2 {strides = array<i32>} : memref<4x1024xf32, #tpu.memory_space<vmem>>, vector<2x1024xf32>,
    %c0_6 = arith.constant 0 : index
    %c0_7 = arith.constant 0 : index
    %4 = vector.load %arg7[%c0_6, %c0_7] : memref<4x1024xf32, #tpu.memory_space<vmem>>, vector<4x1024xf32>
    %5 = arith.truncf %4 : vector<4x1024xf32> to vector<4x1024xbf16>
    %c0_8 = arith.constant 0 : index
    %c0_9 = arith.constant 0 : index
    %6 = vector.load %arg2[%c0_8, %c0_9] : memref<1024x128xbf16, #tpu.memory_space<vmem>>, vector<1024x128xbf16>
    %cst = arith.constant dense<0.000000e+00> : vector<4x128xf32>
    %7 = tpu.matmul %5, %6, %cst {dimension_numbers = #tpu.dot_dimension_numbers<[1], [0], [0], [1], [0, 0, 1, 1], [], []>} : vector<4x1024xbf16>, vector<1024x128xbf16>, vector<4x128xf32> -> vector<4x128xf32>
    %c0_10 = arith.constant 0 : index
    %c0_11 = arith.constant 0 : index
    %8 = vector.load %arg3[%c0_10, %c0_11] : memref<1x128xf32, #tpu.memory_space<vmem>>, vector<1x128xf32>
    %9 = vector.broadcast %8 : vector<1x128xf32> to vector<4x128xf32>
    %10 = arith.addf %7, %9 : vector<4x128xf32>
    %cst_12 = arith.constant 0.000000e+00 : f32
    %11 = vector.broadcast %cst_12 : f32 to vector<4x128xf32>
    %12 = arith.maximumf %10, %11 : vector<4x128xf32>
    %13 = arith.truncf %12 : vector<4x128xf32> to vector<4x128xbf16>
    %c0_13 = arith.constant 0 : index
    %c0_14 = arith.constant 0 : index
    %14 = vector.load %arg4[%c0_13, %c0_14] : memref<128x128xbf16, #tpu.memory_space<vmem>>, vector<128x128xbf16>
    %cst_15 = arith.constant dense<0.000000e+00> : vector<4x128xf32>
    %15 = tpu.matmul %13, %14, %cst_15 {dimension_numbers = #tpu.dot_dimension_numbers<[1], [0], [0], [1], [0, 0, 1, 1], [], []>} : vector<4x128xbf16>, vector<128x128xbf16>, vector<4x128xf32> -> vector<4x128xf32>
    %c0_16 = arith.constant 0 : index
    %c0_17 = arith.constant 0 : index
    %16 = vector.load %arg5[%c0_16, %c0_17] : memref<1x128xf32, #tpu.memory_space<vmem>>, vector<1x128xf32>
    %17 = vector.broadcast %16 : vector<1x128xf32> to vector<4x128xf32>
    %18 = arith.addf %15, %17 : vector<4x128xf32>
    %c0_18 = arith.constant 0 : index
    %c0_19 = arith.constant 0 : index
    %19 = vector.load %arg6[%c0_18, %c0_19] : memref<4x128xf32, #tpu.memory_space<vmem>>, vector<4x128xf32>
    tpu.vector_store %arg6[%c0_18, %c0_19], %18 {strides = array<i32>} : memref<4x128xf32, #tpu.memory_space<vmem>>, vector<4x128xf32>,
    return
  }
}

</mosaic_0001>

<llo_original>
// kernel: tpu_custom_call.1
$region0: #{tpu_custom_call.1}
  #allocation0 [shape = 'u32[]', space=smem, size = 0x4, offset = 0x4, fixed_abs, tag = 'smem constant byte address 0x4 - core index']
  #allocation1 [shape = 'u32[144,128]{1,0:T(1,128)}', space=vmem, size = 0x12000, scoped, tag = 'internal scratch']
  #allocation2 [shape = 'f32[4,1024]{1,0:T(4,128)}', space=vmem, size = 0x4000, scoped, tag = 'scratch operand']
  %s0 = inlined_call_operand.hbm [shape: f32[2,1024], index: 0, kind: input, shape index: {}]
  %s1 = inlined_call_operand.hbm [shape: f32[2,1024], index: 1, kind: input, shape index: {}]
  %s2 = inlined_call_operand.hbm [shape: bf16[1024,128], index: 2, kind: input, shape index: {}]
  %s3 = inlined_call_operand.vmem [shape: f32[1,128], index: 3, kind: input, shape index: {}]
  %s4 = inlined_call_operand.hbm [shape: bf16[128,128], index: 4, kind: input, shape index: {}]
  %s5 = inlined_call_operand.vmem [shape: f32[1,128], index: 5, kind: input, shape index: {}]
  %s6 = inlined_call_operand.hbm [shape: f32[4,128], index: 6, kind: output, shape index: {}]
  %s7 = sld [smem:[#allocation0]]
  $region50: #{tpu_custom_call.1} parent=0
    _
  %s9 = ssub.s32 1, %s7
  %s10 = scalar_select 0, %s9, %s7
  $region1: #{tpu_custom_call.1} parent=0
    #allocation3 [shape = 'u8[8192]{0}', space=vmem, size = 0x2000, scoped, tag = 'input window, operand 0, single buffered']
    #allocation4 [shape = 's32[1]{0}', space=sflag, size = 0x4, scoped, tag = 'scoped memory for tpu_custom_call.1']
    #allocation5 [shape = 's32[1]{0}', space=sflag, size = 0x4, scoped, tag = 'scoped memory for tpu_custom_call.1']
    #allocation6 [shape = 'u8[8192]{0}', space=vmem, size = 0x2000, scoped, tag = 'input window, operand 1, single buffered']
    #allocation7 [shape = 's32[1]{0}', space=sflag, size = 0x4, scoped, tag = 'scoped memory for tpu_custom_call.1']
    #allocation8 [shape = 'u8[262144]{0}', space=vmem, size = 0x40000, scoped, tag = 'input window, operand 2, single buffered']
    #allocation9 [shape = 'u8[32768]{0}', space=vmem, size = 0x8000, scoped, tag = 'input window, operand 4, single buffered']
    #allocation10 [shape = 's32[1]{0}', space=sflag, size = 0x4, scoped, tag = 'scoped memory for tpu_custom_call.1']
    #allocation11 [shape = 'u8[2048]{0}', space=vmem, size = 0x800, scoped, tag = 'output window, operand 0, single buffered']
    %11 = vsyncpa [#allocation4], 0
    %12 = vsyncpa [#allocation7], 0
    %13 = vsyncpa [#allocation10], 0
    %14 = vsyncpa [#allocation5], 0
    // Predicated region
    $region2: #{tpu_custom_call.1} parent=1 // pred_check
      _
    $region3: #{tpu_custom_call.1} parent=1 // pred_check_branch
      %16 = sbr.rel (0) target = $region5
    $region4: #{tpu_custom_call.1} parent=1 // pred_region
      %s18 = ssub.s32 256, 256
      %19 = vsyncadd [#allocation4], %s18
      %s21 = sshll.u32 [#allocation3], 4
      %s22 = int_to_ptr.vmem [resolvable:$true] %s21
      %24 = dma.hbm_to_vmem [thread:$0]  %s0, 256, %s22, [#allocation4]
    $region5: #{tpu_custom_call.1} parent=1 // pred_fallthru
      _
    // Predicated region
    $region6: #{tpu_custom_call.1} parent=1 // pred_check
      _
    $region7: #{tpu_custom_call.1} parent=1 // pred_check_branch
      %26 = sbr.rel (0) target = $region9
    $region8: #{tpu_custom_call.1} parent=1 // pred_region
      %s28 = ssub.s32 256, 256
      %29 = vsyncadd [#allocation7], %s28
      %s31 = sshll.u32 [#allocation6], 4
      %s32 = int_to_ptr.vmem [resolvable:$true] %s31
      %34 = dma.hbm_to_vmem [thread:$0]  %s1, 256, %s32, [#allocation7]
    $region9: #{tpu_custom_call.1} parent=1 // pred_fallthru
      _
    // Predicated region
    $region10: #{tpu_custom_call.1} parent=1 // pred_check
      _
    $region11: #{tpu_custom_call.1} parent=1 // pred_check_branch
      %36 = sbr.rel (0) target = $region13
    $region12: #{tpu_custom_call.1} parent=1 // pred_region
      %s38 = ssub.s32 8192, 8192
      %39 = vsyncadd [#allocation7], %s38
      %s40 = sshll.u32 [#allocation8], 4
      %s41 = int_to_ptr.vmem [resolvable:$true] %s40
      %46 = dma.hbm_to_vmem [thread:$0]  %s2, 8192, %s41, [#allocation7], 64, 64, 4
    $region13: #{tpu_custom_call.1} parent=1 // pred_fallthru
      _
    // Predicated region
    $region14: #{tpu_custom_call.1} parent=1 // pred_check
      _
    $region15: #{tpu_custom_call.1} parent=1 // pred_check_branch
      %48 = sbr.rel (0) target = $region17
    $region16: #{tpu_custom_call.1} parent=1 // pred_region
      _
    $region17: #{tpu_custom_call.1} parent=1 // pred_fallthru
      _
    // Predicated region
    $region18: #{tpu_custom_call.1} parent=1 // pred_check
      _
    $region19: #{tpu_custom_call.1} parent=1 // pred_check_branch
      %50 = sbr.rel (0) target = $region21
    $region20: #{tpu_custom_call.1} parent=1 // pred_region
      %s52 = ssub.s32 1024, 1024
      %53 = vsyncadd [#allocation10], %s52
      %s54 = sshll.u32 [#allocation9], 4
      %s55 = int_to_ptr.vmem [resolvable:$true] %s54
      %60 = dma.hbm_to_vmem [thread:$0]  %s4, 1024, %s55, [#allocation10], 64, 64, 4
    $region21: #{tpu_custom_call.1} parent=1 // pred_fallthru
      _
    // Predicated region
    $region22: #{tpu_custom_call.1} parent=1 // pred_check
      _
    $region23: #{tpu_custom_call.1} parent=1 // pred_check_branch
      %62 = sbr.rel (0) target = $region25
    $region24: #{tpu_custom_call.1} parent=1 // pred_region
      _
    $region25: #{tpu_custom_call.1} parent=1 // pred_fallthru
      _
    // Predicated region
    $region26: #{tpu_custom_call.1} parent=1 // pred_check
      _
    $region27: #{tpu_custom_call.1} parent=1 // pred_check_branch
      %64 = sbr.rel (0) target = $region29
    $region28: #{tpu_custom_call.1} parent=1 // pred_region
      %65 = dma.done [#allocation4], 256
    $region29: #{tpu_custom_call.1} parent=1 // pred_fallthru
      _
    // Predicated region
    $region30: #{tpu_custom_call.1} parent=1 // pred_check
      _
    $region31: #{tpu_custom_call.1} parent=1 // pred_check_branch
      %67 = sbr.rel (0) target = $region33
    $region32: #{tpu_custom_call.1} parent=1 // pred_region
      %68 = dma.done [#allocation7], 256
    $region33: #{tpu_custom_call.1} parent=1 // pred_fallthru
      _
    // Predicated region
    $region34: #{tpu_custom_call.1} parent=1 // pred_check
      _
    $region35: #{tpu_custom_call.1} parent=1 // pred_check_branch
      %70 = sbr.rel (0) target = $region37
    $region36: #{tpu_custom_call.1} parent=1 // pred_region
      %71 = dma.done [#allocation7], 8192
    $region37: #{tpu_custom_call.1} parent=1 // pred_fallthru
      _
    // Predicated region
    $region38: #{tpu_custom_call.1} parent=1 // pred_check
      _
    $region39: #{tpu_custom_call.1} parent=1 // pred_check_branch
      %73 = sbr.rel (0) target = $region41
    $region40: #{tpu_custom_call.1} parent=1 // pred_region
      %74 = dma.done [#allocation10], 1024
    $region41: #{tpu_custom_call.1} parent=1 // pred_fallthru
      _
    %v76 = vld [vmem:[#allocation3] sm:$0xff]
    %v77 = vld [vmem:[#allocation3 + $0x8] sm:$0xff]
    %v80 = vcombine.high %v76, %v76
    %v82 = vunpack.c.l.s4 1983009808
    %v83 = vunpack.c.0.s8 %v82
    %v84 = vlaneseq
    %v85 = vshrl.u32 %v84, 7
    %v86 = vsub.s32 %v83, %v85
    %v87 = vrot.slane %v76, %v86
    %v89 = vunpack.c.l.s4 1983009808
    %v90 = vunpack.c.0.s8 %v89
    %v91 = vlaneseq
    %v92 = vshrl.u32 %v91, 7
    %v93 = vsub.s32 %v90, %v92
    %v94 = vrot.slane %v80, %v93
    %v95 = vcombine.high %v77, %v77
    %v97 = vunpack.c.l.s4 1983009808
    %v98 = vunpack.c.0.s8 %v97
    %v99 = vlaneseq
    %v100 = vshrl.u32 %v99, 7
    %v101 = vsub.s32 %v98, %v100
    %v102 = vrot.slane %v77, %v101
    %v104 = vunpack.c.l.s4 1983009808
    %v105 = vunpack.c.0.s8 %v104
    %v106 = vlaneseq
    %v107 = vshrl.u32 %v106, 7
    %v108 = vsub.s32 %v105, %v107
    %v109 = vrot.slane %v95, %v108
    %114 = vst [vmem:[#allocation2] sm:$0x33] %v87
    %115 = vst [vmem:[#allocation2 + $0x8] sm:$0x33] %v94
    %116 = vst [vmem:[#allocation2 + $0x10] sm:$0x33] %v102
    %117 = vst [vmem:[#allocation2 + $0x18] sm:$0x33] %v109
    %v118 = vld [vmem:[#allocation6] sm:$0xff]
    %v119 = vld [vmem:[#allocation6 + $0x8] sm:$0xff]
    %v122 = vcombine.low %v118, %v118
    %v124 = vunpack.c.l.s4 1983009808
    %v125 = vunpack.c.0.s8 %v124
    %v126 = vlaneseq
    %v127 = vshrl.u32 %v126, 7
    %v128 = vsub.s32 %v125, %v127
    %v129 = vrot.slane %v122, %v128
    %v131 = vunpack.c.l.s4 1983009808
    %v132 = vunpack.c.0.s8 %v131
    %v133 = vlaneseq
    %v134 = vshrl.u32 %v133, 7
    %v135 = vsub.s32 %v132, %v134
    %v136 = vrot.slane %v118, %v135
    %v137 = vcombine.low %v119, %v119
    %v139 = vunpack.c.l.s4 1983009808
    %v140 = vunpack.c.0.s8 %v139
    %v141 = vlaneseq
    %v142 = vshrl.u32 %v141, 7
    %v143 = vsub.s32 %v140, %v142
    %v144 = vrot.slane %v137, %v143
    %v146 = vunpack.c.l.s4 1983009808
    %v147 = vunpack.c.0.s8 %v146
    %v148 = vlaneseq
    %v149 = vshrl.u32 %v148, 7
    %v150 = vsub.s32 %v147, %v149
    %v151 = vrot.slane %v119, %v150
    %156 = vst [vmem:[#allocation2] sm:$0xcc] %v129
    %157 = vst [vmem:[#allocation2 + $0x8] sm:$0xcc] %v136
    %158 = vst [vmem:[#allocation2 + $0x10] sm:$0xcc] %v144
    %159 = vst [vmem:[#allocation2 + $0x18] sm:$0xcc] %v151
    %v160 = vld [vmem:[#allocation2] sm:$0xff]
    %v161 = vld [vmem:[#allocation2 + $0x8] sm:$0xff]
    %v162 = vld [vmem:[#allocation2 + $0x10] sm:$0xff]
    %v163 = vld [vmem:[#allocation2 + $0x18] sm:$0xff]
    %v168 = vcombine.high %v160, %v160
    %v169 = vcombine.high %v161, %v161
    %v170 = vcombine.high %v162, %v162
    %v171 = vcombine.high %v163, %v163
    %v176 = vpack.c.bf16 %v160, %v160
    %v177 = vpack.c.bf16 %v168, %v168
    %v178 = vpack.c.bf16 %v161, %v161
    %v179 = vpack.c.bf16 %v169, %v169
    %v180 = vpack.c.bf16 %v162, %v162
    %v181 = vpack.c.bf16 %v170, %v170
    %v182 = vpack.c.bf16 %v163, %v163
    %v183 = vpack.c.bf16 %v171, %v171
    %v184 = vld [vmem:[#allocation8] sm:$0xf]
    %v185 = vld [vmem:[#allocation8 + $0x4] sm:$0xf]
    %v186 = vld [vmem:[#allocation8 + $0x8] sm:$0xf]
    %v187 = vld [vmem:[#allocation8 + $0xc] sm:$0xf]
    %v188 = vld [vmem:[#allocation8 + $0x10] sm:$0xf]
    %v189 = vld [vmem:[#allocation8 + $0x14] sm:$0xf]
    %v190 = vld [vmem:[#allocation8 + $0x18] sm:$0xf]
    %v191 = vld [vmem:[#allocation8 + $0x1c] sm:$0xf]
    %v192 = vld [vmem:[#allocation8 + $0x20] sm:$0xf]
    %v193 = vld [vmem:[#allocation8 + $0x24] sm:$0xf]
    %v194 = vld [vmem:[#allocation8 + $0x28] sm:$0xf]
    %v195 = vld [vmem:[#allocation8 + $0x2c] sm:$0xf]
    %v196 = vld [vmem:[#allocation8 + $0x30] sm:$0xf]
    %v197 = vld [vmem:[#allocation8 + $0x34] sm:$0xf]
    %v198 = vld [vmem:[#allocation8 + $0x38] sm:$0xf]
    %v199 = vld [vmem:[#allocation8 + $0x3c] sm:$0xf]
    %v200 = vld [vmem:[#allocation8 + $0x40] sm:$0xf]
    %v201 = vld [vmem:[#allocation8 + $0x44] sm:$0xf]
    %v202 = vld [vmem:[#allocation8 + $0x48] sm:$0xf]
    %v203 = vld [vmem:[#allocation8 + $0x4c] sm:$0xf]
    %v204 = vld [vmem:[#allocation8 + $0x50] sm:$0xf]
    %v205 = vld [vmem:[#allocation8 + $0x54] sm:$0xf]
    %v206 = vld [vmem:[#allocation8 + $0x58] sm:$0xf]
    %v207 = vld [vmem:[#allocation8 + $0x5c] sm:$0xf]
    %v208 = vld [vmem:[#allocation8 + $0x60] sm:$0xf]
    %v209 = vld [vmem:[#allocation8 + $0x64] sm:$0xf]
    %v210 = vld [vmem:[#allocation8 + $0x68] sm:$0xf]
    %v211 = vld [vmem:[#allocation8 + $0x6c] sm:$0xf]
    %v212 = vld [vmem:[#allocation8 + $0x70] sm:$0xf]
    %v213 = vld [vmem:[#allocation8 + $0x74] sm:$0xf]
    %v214 = vld [vmem:[#allocation8 + $0x78] sm:$0xf]
    %v215 = vld [vmem:[#allocation8 + $0x7c] sm:$0xf]
    %v216 = vld [vmem:[#allocation8 + $0x80] sm:$0xf]
    %v217 = vld [vmem:[#allocation8 + $0x84] sm:$0xf]
    %v218 = vld [vmem:[#allocation8 + $0x88] sm:$0xf]
    %v219 = vld [vmem:[#allocation8 + $0x8c] sm:$0xf]
    %v220 = vld [vmem:[#allocation8 + $0x90] sm:$0xf]
    %v221 = vld [vmem:[#allocation8 + $0x94] sm:$0xf]
    %v222 = vld [vmem:[#allocation8 + $0x98] sm:$0xf]
    %v223 = vld [vmem:[#allocation8 + $0x9c] sm:$0xf]
    %v224 = vld [vmem:[#allocation8 + $0xa0] sm:$0xf]
    %v225 = vld [vmem:[#allocation8 + $0xa4] sm:$0xf]
    %v226 = vld [vmem:[#allocation8 + $0xa8] sm:$0xf]
    %v227 = vld [vmem:[#allocation8 + $0xac] sm:$0xf]
    %v228 = vld [vmem:[#allocation8 + $0xb0] sm:$0xf]
    %v229 = vld [vmem:[#allocation8 + $0xb4] sm:$0xf]
    %v230 = vld [vmem:[#allocation8 + $0xb8] sm:$0xf]
    %v231 = vld [vmem:[#allocation8 + $0xbc] sm:$0xf]
    %v232 = vld [vmem:[#allocation8 + $0xc0] sm:$0xf]
    %v233 = vld [vmem:[#allocation8 + $0xc4] sm:$0xf]
    %v234 = vld [vmem:[#allocation8 + $0xc8] sm:$0xf]
    %v235 = vld [vmem:[#allocation8 + $0xcc] sm:$0xf]
    %v236 = vld [vmem:[#allocation8 + $0xd0] sm:$0xf]
    %v237 = vld [vmem:[#allocation8 + $0xd4] sm:$0xf]
    %v238 = vld [vmem:[#allocation8 + $0xd8] sm:$0xf]
    %v239 = vld [vmem:[#allocation8 + $0xdc] sm:$0xf]
    %v240 = vld [vmem:[#allocation8 + $0xe0] sm:$0xf]
    %v241 = vld [vmem:[#allocation8 + $0xe4] sm:$0xf]
    %v242 = vld [vmem:[#allocation8 + $0xe8] sm:$0xf]
    %v243 = vld [vmem:[#allocation8 + $0xec] sm:$0xf]
    %v244 = vld [vmem:[#allocation8 + $0xf0] sm:$0xf]
    %v245 = vld [vmem:[#allocation8 + $0xf4] sm:$0xf]
    %v246 = vld [vmem:[#allocation8 + $0xf8] sm:$0xf]
    %v247 = vld [vmem:[#allocation8 + $0xfc] sm:$0xf]
    %v248 = vld [vmem:[#allocation8 + $0x100] sm:$0xf]
    %v249 = vld [vmem:[#allocation8 + $0x104] sm:$0xf]
    %v250 = vld [vmem:[#allocation8 + $0x108] sm:$0xf]
    %v251 = vld [vmem:[#allocation8 + $0x10c] sm:$0xf]
    %v252 = vld [vmem:[#allocation8 + $0x110] sm:$0xf]
    %v253 = vld [vmem:[#allocation8 + $0x114] sm:$0xf]
    %v254 = vld [vmem:[#allocation8 + $0x118] sm:$0xf]
    %v255 = vld [vmem:[#allocation8 + $0x11c] sm:$0xf]
    %v256 = vld [vmem:[#allocation8 + $0x120] sm:$0xf]
    %v257 = vld [vmem:[#allocation8 + $0x124] sm:$0xf]
    %v258 = vld [vmem:[#allocation8 + $0x128] sm:$0xf]
    %v259 = vld [vmem:[#allocation8 + $0x12c] sm:$0xf]
    %v260 = vld [vmem:[#allocation8 + $0x130] sm:$0xf]
    %v261 = vld [vmem:[#allocation8 + $0x134] sm:$0xf]
    %v262 = vld [vmem:[#allocation8 + $0x138] sm:$0xf]
    %v263 = vld [vmem:[#allocation8 + $0x13c] sm:$0xf]
    %v264 = vld [vmem:[#allocation8 + $0x140] sm:$0xf]
    %v265 = vld [vmem:[#allocation8 + $0x144] sm:$0xf]
    %v266 = vld [vmem:[#allocation8 + $0x148] sm:$0xf]
    %v267 = vld [vmem:[#allocation8 + $0x14c] sm:$0xf]
    %v268 = vld [vmem:[#allocation8 + $0x150] sm:$0xf]
    %v269 = vld [vmem:[#allocation8 + $0x154] sm:$0xf]
    %v270 = vld [vmem:[#allocation8 + $0x158] sm:$0xf]
    %v271 = vld [vmem:[#allocation8 + $0x15c] sm:$0xf]
    %v272 = vld [vmem:[#allocation8 + $0x160] sm:$0xf]
    %v273 = vld [vmem:[#allocation8 + $0x164] sm:$0xf]
    %v274 = vld [vmem:[#allocation8 + $0x168] sm:$0xf]
    %v275 = vld [vmem:[#allocation8 + $0x16c] sm:$0xf]
    %v276 = vld [vmem:[#allocation8 + $0x170] sm:$0xf]
    %v277 = vld [vmem:[#allocation8 + $0x174] sm:$0xf]
    %v278 = vld [vmem:[#allocation8 + $0x178] sm:$0xf]
    %v279 = vld [vmem:[#allocation8 + $0x17c] sm:$0xf]
    %v280 = vld [vmem:[#allocation8 + $0x180] sm:$0xf]
    %v281 = vld [vmem:[#allocation8 + $0x184] sm:$0xf]
    %v282 = vld [vmem:[#allocation8 + $0x188] sm:$0xf]
    %v283 = vld [vmem:[#allocation8 + $0x18c] sm:$0xf]
    %v284 = vld [vmem:[#allocation8 + $0x190] sm:$0xf]
    %v285 = vld [vmem:[#allocation8 + $0x194] sm:$0xf]
    %v286 = vld [vmem:[#allocation8 + $0x198] sm:$0xf]
    %v287 = vld [vmem:[#allocation8 + $0x19c] sm:$0xf]
    %v288 = vld [vmem:[#allocation8 + $0x1a0] sm:$0xf]
    %v289 = vld [vmem:[#allocation8 + $0x1a4] sm:$0xf]
    %v290 = vld [vmem:[#allocation8 + $0x1a8] sm:$0xf]
    %v291 = vld [vmem:[#allocation8 + $0x1ac] sm:$0xf]
    %v292 = vld [vmem:[#allocation8 + $0x1b0] sm:$0xf]
    %v293 = vld [vmem:[#allocation8 + $0x1b4] sm:$0xf]
    %v294 = vld [vmem:[#allocation8 + $0x1b8] sm:$0xf]
    %v295 = vld [vmem:[#allocation8 + $0x1bc] sm:$0xf]
    %v296 = vld [vmem:[#allocation8 + $0x1c0] sm:$0xf]
    %v297 = vld [vmem:[#allocation8 + $0x1c4] sm:$0xf]
    %v298 = vld [vmem:[#allocation8 + $0x1c8] sm:$0xf]
    %v299 = vld [vmem:[#allocation8 + $0x1cc] sm:$0xf]
    %v300 = vld [vmem:[#allocation8 + $0x1d0] sm:$0xf]
    %v301 = vld [vmem:[#allocation8 + $0x1d4] sm:$0xf]
    %v302 = vld [vmem:[#allocation8 + $0x1d8] sm:$0xf]
    %v303 = vld [vmem:[#allocation8 + $0x1dc] sm:$0xf]
    %v304 = vld [vmem:[#allocation8 + $0x1e0] sm:$0xf]
    %v305 = vld [vmem:[#allocation8 + $0x1e4] sm:$0xf]
    %v306 = vld [vmem:[#allocation8 + $0x1e8] sm:$0xf]
    %v307 = vld [vmem:[#allocation8 + $0x1ec] sm:$0xf]
    %v308 = vld [vmem:[#allocation8 + $0x1f0] sm:$0xf]
    %v309 = vld [vmem:[#allocation8 + $0x1f4] sm:$0xf]
    %v310 = vld [vmem:[#allocation8 + $0x1f8] sm:$0xf]
    %v311 = vld [vmem:[#allocation8 + $0x1fc] sm:$0xf]
    %v312 = vld [vmem:[%s3] sm:$0x1]
    %v314 = vlaneseq
    %v315 = vshrl.u32 %v314, 7
    %v316 = vsub.s32 0, %v315
    %v317 = vrot.slane %v312, %v316
    %v447 = vunpack.c.l.b16 %v184
    %v448 = vunpack.c.l.b16 %v185
    %v449 = vunpack.c.l.b16 %v186
    %v450 = vunpack.c.l.b16 %v187
    %v451 = vunpack.c.l.b16 %v188
    %v452 = vunpack.c.l.b16 %v189
    %v453 = vunpack.c.l.b16 %v190
    %v454 = vunpack.c.l.b16 %v191
    %v455 = vunpack.c.l.b16 %v192
    %v456 = vunpack.c.l.b16 %v193
    %v457 = vunpack.c.l.b16 %v194
    %v458 = vunpack.c.l.b16 %v195
    %v459 = vunpack.c.l.b16 %v196
    %v460 = vunpack.c.l.b16 %v197
    %v461 = vunpack.c.l.b16 %v198
    %v462 = vunpack.c.l.b16 %v199
    %v463 = vunpack.c.l.b16 %v200
    %v464 = vunpack.c.l.b16 %v201
    %v465 = vunpack.c.l.b16 %v202
    %v466 = vunpack.c.l.b16 %v203
    %v467 = vunpack.c.l.b16 %v204
    %v468 = vunpack.c.l.b16 %v205
    %v469 = vunpack.c.l.b16 %v206
    %v470 = vunpack.c.l.b16 %v207
    %v471 = vunpack.c.l.b16 %v208
    %v472 = vunpack.c.l.b16 %v209
    %v473 = vunpack.c.l.b16 %v210
    %v474 = vunpack.c.l.b16 %v211
    %v475 = vunpack.c.l.b16 %v212
    %v476 = vunpack.c.l.b16 %v213
    %v477 = vunpack.c.l.b16 %v214
    %v478 = vunpack.c.l.b16 %v215
    %v479 = vunpack.c.l.b16 %v216
    %v480 = vunpack.c.l.b16 %v217
    %v481 = vunpack.c.l.b16 %v218
    %v482 = vunpack.c.l.b16 %v219
    %v483 = vunpack.c.l.b16 %v220
    %v484 = vunpack.c.l.b16 %v221
    %v485 = vunpack.c.l.b16 %v222
    %v486 = vunpack.c.l.b16 %v223
    %v487 = vunpack.c.l.b16 %v224
    %v488 = vunpack.c.l.b16 %v225
    %v489 = vunpack.c.l.b16 %v226
    %v490 = vunpack.c.l.b16 %v227
    %v491 = vunpack.c.l.b16 %v228
    %v492 = vunpack.c.l.b16 %v229
    %v493 = vunpack.c.l.b16 %v230
    %v494 = vunpack.c.l.b16 %v231
    %v495 = vunpack.c.l.b16 %v232
    %v496 = vunpack.c.l.b16 %v233
    %v497 = vunpack.c.l.b16 %v234
    %v498 = vunpack.c.l.b16 %v235
    %v499 = vunpack.c.l.b16 %v236
    %v500 = vunpack.c.l.b16 %v237
    %v501 = vunpack.c.l.b16 %v238
    %v502 = vunpack.c.l.b16 %v239
    %v503 = vunpack.c.l.b16 %v240
    %v504 = vunpack.c.l.b16 %v241
    %v505 = vunpack.c.l.b16 %v242
    %v506 = vunpack.c.l.b16 %v243
    %v507 = vunpack.c.l.b16 %v244
    %v508 = vunpack.c.l.b16 %v245
    %v509 = vunpack.c.l.b16 %v246
    %v510 = vunpack.c.l.b16 %v247
    %v511 = vunpack.c.l.b16 %v248
    %v512 = vunpack.c.l.b16 %v249
    %v513 = vunpack.c.l.b16 %v250
    %v514 = vunpack.c.l.b16 %v251
    %v515 = vunpack.c.l.b16 %v252
    %v516 = vunpack.c.l.b16 %v253
    %v517 = vunpack.c.l.b16 %v254
    %v518 = vunpack.c.l.b16 %v255
    %v519 = vunpack.c.l.b16 %v256
    %v520 = vunpack.c.l.b16 %v257
    %v521 = vunpack.c.l.b16 %v258
    %v522 = vunpack.c.l.b16 %v259
    %v523 = vunpack.c.l.b16 %v260
    %v524 = vunpack.c.l.b16 %v261
    %v525 = vunpack.c.l.b16 %v262
    %v526 = vunpack.c.l.b16 %v263
    %v527 = vunpack.c.l.b16 %v264
    %v528 = vunpack.c.l.b16 %v265
    %v529 = vunpack.c.l.b16 %v266
    %v530 = vunpack.c.l.b16 %v267
    %v531 = vunpack.c.l.b16 %v268
    %v532 = vunpack.c.l.b16 %v269
    %v533 = vunpack.c.l.b16 %v270
    %v534 = vunpack.c.l.b16 %v271
    %v535 = vunpack.c.l.b16 %v272
    %v536 = vunpack.c.l.b16 %v273
    %v537 = vunpack.c.l.b16 %v274
    %v538 = vunpack.c.l.b16 %v275
    %v539 = vunpack.c.l.b16 %v276
    %v540 = vunpack.c.l.b16 %v277
    %v541 = vunpack.c.l.b16 %v278
    %v542 = vunpack.c.l.b16 %v279
    %v543 = vunpack.c.l.b16 %v280
    %v544 = vunpack.c.l.b16 %v281
    %v545 = vunpack.c.l.b16 %v282
    %v546 = vunpack.c.l.b16 %v283
    %v547 = vunpack.c.l.b16 %v284
    %v548 = vunpack.c.l.b16 %v285
    %v549 = vunpack.c.l.b16 %v286
    %v550 = vunpack.c.l.b16 %v287
    %v551 = vunpack.c.l.b16 %v288
    %v552 = vunpack.c.l.b16 %v289
    %v553 = vunpack.c.l.b16 %v290
    %v554 = vunpack.c.l.b16 %v291
    %v555 = vunpack.c.l.b16 %v292
    %v556 = vunpack.c.l.b16 %v293
    %v557 = vunpack.c.l.b16 %v294
    %v558 = vunpack.c.l.b16 %v295
    %v559 = vunpack.c.l.b16 %v296
    %v560 = vunpack.c.l.b16 %v297
    %v561 = vunpack.c.l.b16 %v298
    %v562 = vunpack.c.l.b16 %v299
    %v563 = vunpack.c.l.b16 %v300
    %v564 = vunpack.c.l.b16 %v301
    %v565 = vunpack.c.l.b16 %v302
    %v566 = vunpack.c.l.b16 %v303
    %v567 = vunpack.c.l.b16 %v304
    %v568 = vunpack.c.l.b16 %v305
    %v569 = vunpack.c.l.b16 %v306
    %v570 = vunpack.c.l.b16 %v307
    %v571 = vunpack.c.l.b16 %v308
    %v572 = vunpack.c.l.b16 %v309
    %v573 = vunpack.c.l.b16 %v310
    %v574 = vunpack.c.l.b16 %v311
    %v575 = vpack.c.b16 %v448, %v447
    %v576 = vpack.c.b16 %v450, %v449
    %v577 = vpack.c.b16 %v452, %v451
    %v578 = vpack.c.b16 %v454, %v453
    %v579 = vpack.c.b16 %v456, %v455
    %v580 = vpack.c.b16 %v458, %v457
    %v581 = vpack.c.b16 %v460, %v459
    %v582 = vpack.c.b16 %v462, %v461
    %v583 = vpack.c.b16 %v464, %v463
    %v584 = vpack.c.b16 %v466, %v465
    %v585 = vpack.c.b16 %v468, %v467
    %v586 = vpack.c.b16 %v470, %v469
    %v587 = vpack.c.b16 %v472, %v471
    %v588 = vpack.c.b16 %v474, %v473
    %v589 = vpack.c.b16 %v476, %v475
    %v590 = vpack.c.b16 %v478, %v477
    %v591 = vpack.c.b16 %v480, %v479
    %v592 = vpack.c.b16 %v482, %v481
    %v593 = vpack.c.b16 %v484, %v483
    %v594 = vpack.c.b16 %v486, %v485
    %v595 = vpack.c.b16 %v488, %v487
    %v596 = vpack.c.b16 %v490, %v489
    %v597 = vpack.c.b16 %v492, %v491
    %v598 = vpack.c.b16 %v494, %v493
    %v599 = vpack.c.b16 %v496, %v495
    %v600 = vpack.c.b16 %v498, %v497
    %v601 = vpack.c.b16 %v500, %v499
    %v602 = vpack.c.b16 %v502, %v501
    %v603 = vpack.c.b16 %v504, %v503
    %v604 = vpack.c.b16 %v506, %v505
    %v605 = vpack.c.b16 %v508, %v507
    %v606 = vpack.c.b16 %v510, %v509
    %v607 = vpack.c.b16 %v512, %v511
    %v608 = vpack.c.b16 %v514, %v513
    %v609 = vpack.c.b16 %v516, %v515
    %v610 = vpack.c.b16 %v518, %v517
    %v611 = vpack.c.b16 %v520, %v519
    %v612 = vpack.c.b16 %v522, %v521
    %v613 = vpack.c.b16 %v524, %v523
    %v614 = vpack.c.b16 %v526, %v525
    %v615 = vpack.c.b16 %v528, %v527
    %v616 = vpack.c.b16 %v530, %v529
    %v617 = vpack.c.b16 %v532, %v531
    %v618 = vpack.c.b16 %v534, %v533
    %v619 = vpack.c.b16 %v536, %v535
    %v620 = vpack.c.b16 %v538, %v537
    %v621 = vpack.c.b16 %v540, %v539
    %v622 = vpack.c.b16 %v542, %v541
    %v623 = vpack.c.b16 %v544, %v543
    %v624 = vpack.c.b16 %v546, %v545
    %v625 = vpack.c.b16 %v548, %v547
    %v626 = vpack.c.b16 %v550, %v549
    %v627 = vpack.c.b16 %v552, %v551
    %v628 = vpack.c.b16 %v554, %v553
    %v629 = vpack.c.b16 %v556, %v555
    %v630 = vpack.c.b16 %v558, %v557
    %v631 = vpack.c.b16 %v560, %v559
    %v632 = vpack.c.b16 %v562, %v561
    %v633 = vpack.c.b16 %v564, %v563
    %v634 = vpack.c.b16 %v566, %v565
    %v635 = vpack.c.b16 %v568, %v567
    %v636 = vpack.c.b16 %v570, %v569
    %v637 = vpack.c.b16 %v572, %v571
    %v638 = vpack.c.b16 %v574, %v573
    %703 = vmatprep.subr.bf16.mxu0 0
    %704 = vmatpush1.bf16.msra.mxu0 %v575
    %705 = vmatprep.subr.bf16.mxu0 0
    %706 = vmatpush1.bf16.msra.mxu0 %v576
    %707 = vmatprep.subr.bf16.mxu0 0
    %708 = vmatpush1.bf16.msra.mxu0 %v577
    %709 = vmatprep.subr.bf16.mxu0 0
    %710 = vmatpush1.bf16.msra.mxu0 %v578
    %711 = vmatprep.subr.bf16.mxu0 0
    %712 = vmatpush1.bf16.msra.mxu0 %v579
    %713 = vmatprep.subr.bf16.mxu0 0
    %714 = vmatpush1.bf16.msra.mxu0 %v580
    %715 = vmatprep.subr.bf16.mxu0 0
    %716 = vmatpush1.bf16.msra.mxu0 %v581
    %717 = vmatprep.subr.bf16.mxu0 0
    %718 = vmatpush1.bf16.msra.mxu0 %v582
    %719 = vmatprep.subr.bf16.mxu0 0
    %720 = vmatpush1.bf16.msra.mxu0 %v583
    %721 = vmatprep.subr.bf16.mxu0 0
    %722 = vmatpush1.bf16.msra.mxu0 %v584
    %723 = vmatprep.subr.bf16.mxu0 0
    %724 = vmatpush1.bf16.msra.mxu0 %v585
    %725 = vmatprep.subr.bf16.mxu0 0
    %726 = vmatpush1.bf16.msra.mxu0 %v586
    %727 = vmatprep.subr.bf16.mxu0 0
    %728 = vmatpush1.bf16.msra.mxu0 %v587
    %729 = vmatprep.subr.bf16.mxu0 0
    %730 = vmatpush1.bf16.msra.mxu0 %v588
    %731 = vmatprep.subr.bf16.mxu0 0
    %732 = vmatpush1.bf16.msra.mxu0 %v589
    %733 = vmatprep.subr.bf16.mxu0 0
    %734 = vmatpush1.bf16.msra.mxu0 %v590
    %735 = vmatprep.mubr.bf16.mxu0 %v177
    %736 = vmatmul.mubr.bf16.gmra.mrb[0].mxu0 %v176
    %v737 = vpop.f32.mrb[0].mxu0
    %v738 = vadd.f32 %v317, %v737
    %v739 = vpop.f32.mrb[0].mxu0
    %v740 = vpop.f32.mrb[0].mxu0
    %v741 = vpop.f32.mrb[0].mxu0
    %742 = vdwg.mxu0
    %743 = vmatprep.subr.bf16.mxu0 0
    %744 = vmatpush1.bf16.msra.mxu0 %v591
    %745 = vmatprep.subr.bf16.mxu0 0
    %746 = vmatpush1.bf16.msra.mxu0 %v592
    %747 = vmatprep.subr.bf16.mxu0 0
    %748 = vmatpush1.bf16.msra.mxu0 %v593
    %749 = vmatprep.subr.bf16.mxu0 0
    %750 = vmatpush1.bf16.msra.mxu0 %v594
    %751 = vmatprep.subr.bf16.mxu0 0
    %752 = vmatpush1.bf16.msra.mxu0 %v595
    %753 = vmatprep.subr.bf16.mxu0 0
    %754 = vmatpush1.bf16.msra.mxu0 %v596
    %755 = vmatprep.subr.bf16.mxu0 0
    %756 = vmatpush1.bf16.msra.mxu0 %v597
    %757 = vmatprep.subr.bf16.mxu0 0
    %758 = vmatpush1.bf16.msra.mxu0 %v598
    %759 = vmatprep.subr.bf16.mxu0 0
    %760 = vmatpush1.bf16.msra.mxu0 %v599
    %761 = vmatprep.subr.bf16.mxu0 0
    %762 = vmatpush1.bf16.msra.mxu0 %v600
    %763 = vmatprep.subr.bf16.mxu0 0
    %764 = vmatpush1.bf16.msra.mxu0 %v601
    %765 = vmatprep.subr.bf16.mxu0 0
    %766 = vmatpush1.bf16.msra.mxu0 %v602
    %767 = vmatprep.subr.bf16.mxu0 0
    %768 = vmatpush1.bf16.msra.mxu0 %v603
    %769 = vmatprep.subr.bf16.mxu0 0
    %770 = vmatpush1.bf16.msra.mxu0 %v604
    %771 = vmatprep.subr.bf16.mxu0 0
    %772 = vmatpush1.bf16.msra.mxu0 %v605
    %773 = vmatprep.subr.bf16.mxu0 0
    %774 = vmatpush1.bf16.msra.mxu0 %v606
    %775 = vmatprep.mubr.bf16.mxu0 %v179
    %776 = vmatmul.mubr.bf16.gmra.mrb[0].mxu0 %v178
    %v777 = vpop.f32.mrb[0].mxu0
    %v778 = vadd.f32 %v738, %v777
    %v779 = vpop.f32.mrb[0].mxu0
    %v780 = vpop.f32.mrb[0].mxu0
    %v781 = vpop.f32.mrb[0].mxu0
    %782 = vdwg.mxu0
    %783 = vmatprep.subr.bf16.mxu0 0
    %784 = vmatpush1.bf16.msra.mxu0 %v607
    %785 = vmatprep.subr.bf16.mxu0 0
    %786 = vmatpush1.bf16.msra.mxu0 %v608
    %787 = vmatprep.subr.bf16.mxu0 0
    %788 = vmatpush1.bf16.msra.mxu0 %v609
    %789 = vmatprep.subr.bf16.mxu0 0
    %790 = vmatpush1.bf16.msra.mxu0 %v610
    %791 = vmatprep.subr.bf16.mxu0 0
    %792 = vmatpush1.bf16.msra.mxu0 %v611
    %793 = vmatprep.subr.bf16.mxu0 0
    %794 = vmatpush1.bf16.msra.mxu0 %v612
    %795 = vmatprep.subr.bf16.mxu0 0
    %796 = vmatpush1.bf16.msra.mxu0 %v613
    %797 = vmatprep.subr.bf16.mxu0 0
    %798 = vmatpush1.bf16.msra.mxu0 %v614
    %799 = vmatprep.subr.bf16.mxu0 0
    %800 = vmatpush1.bf16.msra.mxu0 %v615
    %801 = vmatprep.subr.bf16.mxu0 0
    %802 = vmatpush1.bf16.msra.mxu0 %v616
    %803 = vmatprep.subr.bf16.mxu0 0
    %804 = vmatpush1.bf16.msra.mxu0 %v617
    %805 = vmatprep.subr.bf16.mxu0 0
    %806 = vmatpush1.bf16.msra.mxu0 %v618
    %807 = vmatprep.subr.bf16.mxu0 0
    %808 = vmatpush1.bf16.msra.mxu0 %v619
    %809 = vmatprep.subr.bf16.mxu0 0
    %810 = vmatpush1.bf16.msra.mxu0 %v620
    %811 = vmatprep.subr.bf16.mxu0 0
    %812 = vmatpush1.bf16.msra.mxu0 %v621
    %813 = vmatprep.subr.bf16.mxu0 0
    %814 = vmatpush1.bf16.msra.mxu0 %v622
    %815 = vmatprep.mubr.bf16.mxu0 %v181
    %816 = vmatmul.mubr.bf16.gmra.mrb[0].mxu0 %v180
    %v817 = vpop.f32.mrb[0].mxu0
    %v818 = vadd.f32 %v778, %v817
    %v819 = vpop.f32.mrb[0].mxu0
    %v820 = vpop.f32.mrb[0].mxu0
    %v821 = vpop.f32.mrb[0].mxu0
    %822 = vdwg.mxu0
    %823 = vmatprep.subr.bf16.mxu0 0
    %824 = vmatpush1.bf16.msra.mxu0 %v623
    %825 = vmatprep.subr.bf16.mxu0 0
    %826 = vmatpush1.bf16.msra.mxu0 %v624
    %827 = vmatprep.subr.bf16.mxu0 0
    %828 = vmatpush1.bf16.msra.mxu0 %v625
    %829 = vmatprep.subr.bf16.mxu0 0
    %830 = vmatpush1.bf16.msra.mxu0 %v626
    %831 = vmatprep.subr.bf16.mxu0 0
    %832 = vmatpush1.bf16.msra.mxu0 %v627
    %833 = vmatprep.subr.bf16.mxu0 0
    %834 = vmatpush1.bf16.msra.mxu0 %v628
    %835 = vmatprep.subr.bf16.mxu0 0
    %836 = vmatpush1.bf16.msra.mxu0 %v629
    %837 = vmatprep.subr.bf16.mxu0 0
    %838 = vmatpush1.bf16.msra.mxu0 %v630
    %839 = vmatprep.subr.bf16.mxu0 0
    %840 = vmatpush1.bf16.msra.mxu0 %v631
    %841 = vmatprep.subr.bf16.mxu0 0
    %842 = vmatpush1.bf16.msra.mxu0 %v632
    %843 = vmatprep.subr.bf16.mxu0 0
    %844 = vmatpush1.bf16.msra.mxu0 %v633
    %845 = vmatprep.subr.bf16.mxu0 0
    %846 = vmatpush1.bf16.msra.mxu0 %v634
    %847 = vmatprep.subr.bf16.mxu0 0
    %848 = vmatpush1.bf16.msra.mxu0 %v635
    %849 = vmatprep.subr.bf16.mxu0 0
    %850 = vmatpush1.bf16.msra.mxu0 %v636
    %851 = vmatprep.subr.bf16.mxu0 0
    %852 = vmatpush1.bf16.msra.mxu0 %v637
    %853 = vmatprep.subr.bf16.mxu0 0
    %854 = vmatpush1.bf16.msra.mxu0 %v638
    %855 = vmatprep.mubr.bf16.mxu0 %v183
    %856 = vmatmul.mubr.bf16.gmra.mrb[0].mxu0 %v182
    %v857 = vpop.f32.mrb[0].mxu0
    %v858 = vadd.f32 %v818, %v857
    %v859 = vpop.f32.mrb[0].mxu0
    %v860 = vpop.f32.mrb[0].mxu0
    %v861 = vpop.f32.mrb[0].mxu0
    %862 = vdwg.mxu0
    %v863 = vmax.f32 %v858, 0.0
    %v864 = vpack.c.bf16 %v863, %v863
    %v865 = vld [vmem:[#allocation9] sm:$0xf]
    %v866 = vld [vmem:[#allocation9 + $0x4] sm:$0xf]
    %v867 = vld [vmem:[#allocation9 + $0x8] sm:$0xf]
    %v868 = vld [vmem:[#allocation9 + $0xc] sm:$0xf]
    %v869 = vld [vmem:[#allocation9 + $0x10] sm:$0xf]
    %v870 = vld [vmem:[#allocation9 + $0x14] sm:$0xf]
    %v871 = vld [vmem:[#allocation9 + $0x18] sm:$0xf]
    %v872 = vld [vmem:[#allocation9 + $0x1c] sm:$0xf]
    %v873 = vld [vmem:[#allocation9 + $0x20] sm:$0xf]
    %v874 = vld [vmem:[#allocation9 + $0x24] sm:$0xf]
    %v875 = vld [vmem:[#allocation9 + $0x28] sm:$0xf]
    %v876 = vld [vmem:[#allocation9 + $0x2c] sm:$0xf]
    %v877 = vld [vmem:[#allocation9 + $0x30] sm:$0xf]
    %v878 = vld [vmem:[#allocation9 + $0x34] sm:$0xf]
    %v879 = vld [vmem:[#allocation9 + $0x38] sm:$0xf]
    %v880 = vld [vmem:[#allocation9 + $0x3c] sm:$0xf]
    %v881 = vld [vmem:[%s5] sm:$0x1]
    %v883 = vlaneseq
    %v884 = vshrl.u32 %v883, 7
    %v885 = vsub.s32 0, %v884
    %v886 = vrot.slane %v881, %v885
    %v904 = vunpack.c.l.b16 %v865
    %v905 = vunpack.c.l.b16 %v866
    %v906 = vunpack.c.l.b16 %v867
    %v907 = vunpack.c.l.b16 %v868
    %v908 = vunpack.c.l.b16 %v869
    %v909 = vunpack.c.l.b16 %v870
    %v910 = vunpack.c.l.b16 %v871
    %v911 = vunpack.c.l.b16 %v872
    %v912 = vunpack.c.l.b16 %v873
    %v913 = vunpack.c.l.b16 %v874
    %v914 = vunpack.c.l.b16 %v875
    %v915 = vunpack.c.l.b16 %v876
    %v916 = vunpack.c.l.b16 %v877
    %v917 = vunpack.c.l.b16 %v878
    %v918 = vunpack.c.l.b16 %v879
    %v919 = vunpack.c.l.b16 %v880
    %v920 = vpack.c.b16 %v905, %v904
    %v921 = vpack.c.b16 %v907, %v906
    %v922 = vpack.c.b16 %v909, %v908
    %v923 = vpack.c.b16 %v911, %v910
    %v924 = vpack.c.b16 %v913, %v912
    %v925 = vpack.c.b16 %v915, %v914
    %v926 = vpack.c.b16 %v917, %v916
    %v927 = vpack.c.b16 %v919, %v918
    %936 = vmatprep.subr.bf16.mxu0 0
    %937 = vmatpush1.bf16.msra.mxu0 %v920
    %938 = vmatprep.subr.bf16.mxu0 0
    %939 = vmatpush1.bf16.msra.mxu0 %v921
    %940 = vmatprep.subr.bf16.mxu0 0
    %941 = vmatpush1.bf16.msra.mxu0 %v922
    %942 = vmatprep.subr.bf16.mxu0 0
    %943 = vmatpush1.bf16.msra.mxu0 %v923
    %944 = vmatprep.subr.bf16.mxu0 0
    %945 = vmatpush1.bf16.msra.mxu0 %v924
    %946 = vmatprep.subr.bf16.mxu0 0
    %947 = vmatpush1.bf16.msra.mxu0 %v925
    %948 = vmatprep.subr.bf16.mxu0 0
    %949 = vmatpush1.bf16.msra.mxu0 %v926
    %950 = vmatprep.subr.bf16.mxu0 0
    %951 = vmatpush1.bf16.msra.mxu0 %v927
    %952 = vmatprep.subr.bf16.mxu0 0
    %953 = vmatpush1.bf16.msra.mxu0 0
    %954 = vmatprep.subr.bf16.mxu0 0
    %955 = vmatpush1.bf16.msra.mxu0 0
    %956 = vmatprep.subr.bf16.mxu0 0
    %957 = vmatpush1.bf16.msra.mxu0 0
    %958 = vmatprep.subr.bf16.mxu0 0
    %959 = vmatpush1.bf16.msra.mxu0 0
    %960 = vmatprep.subr.bf16.mxu0 0
    %961 = vmatpush1.bf16.msra.mxu0 0
    %962 = vmatprep.subr.bf16.mxu0 0
    %963 = vmatpush1.bf16.msra.mxu0 0
    %964 = vmatprep.subr.bf16.mxu0 0
    %965 = vmatpush1.bf16.msra.mxu0 0
    %966 = vmatprep.subr.bf16.mxu0 0
    %967 = vmatpush1.bf16.msra.mxu0 0
    %968 = vmatprep.mubr.bf16.mxu0 0
    %969 = vmatmul.mubr.bf16.gmra.mrb[0].mxu0 %v864
    %v970 = vpop.f32.mrb[0].mxu0
    %v971 = vadd.f32 %v886, %v970
    %v972 = vpop.f32.mrb[0].mxu0
    %v973 = vpop.f32.mrb[0].mxu0
    %v974 = vpop.f32.mrb[0].mxu0
    %975 = vdwg.mxu0
    %976 = vst [vmem:[#allocation11] sm:$0xf] %v971
    // Predicated region
    $region42: #{tpu_custom_call.1} parent=1 // pred_check
      _
    $region43: #{tpu_custom_call.1} parent=1 // pred_check_branch
      %978 = sbr.rel (0) target = $region45
    $region44: #{tpu_custom_call.1} parent=1 // pred_region
      %s980 = ssub.s32 64, 64
      %981 = vsyncadd [#allocation5], %s980
      %s983 = sshll.u32 [#allocation11], 4
      %s984 = int_to_ptr.vmem [resolvable:$true] %s983
      %986 = dma.vmem_to_hbm [thread:$0]  %s984, 64, %s6, [#allocation5]
    $region45: #{tpu_custom_call.1} parent=1 // pred_fallthru
      _
    // Predicated region
    $region46: #{tpu_custom_call.1} parent=1 // pred_check
      _
    $region47: #{tpu_custom_call.1} parent=1 // pred_check_branch
      %988 = sbr.rel (0) target = $region49
    $region48: #{tpu_custom_call.1} parent=1 // pred_region
      %989 = dma.done [#allocation5], 64
    $region49: #{tpu_custom_call.1} parent=1 // pred_fallthru
      _
    %990 = vsyncpa [#allocation4], 1
    %991 = vsyncpa [#allocation7], 1
    %992 = vsyncpa [#allocation10], 1
    %993 = vsyncpa [#allocation5], 1

</llo_original>
